<compile_context>
chip_gen: v7x
topology: tpu7x:2x2x1
jax: 0.10.0
libtpu: 0.0.40
codegen_flags: <defaults>
</compile_context>

<pallas_src>
import jax
import jax.numpy as jnp
from jax.experimental import pallas as pl
from jax.experimental.pallas import tpu as pltpu

_LANES = 128
_TARGET_BUF_BYTES = 4 * 1024 * 1024     # per input, per pipeline buffer
_VMEM_LIMIT_BYTES = 32 * 1024 * 1024    # <= v7x physical (64 MiB), > v5e 16 MiB default


def _sublanes_for(dtype):
    # Native sublane packing: 8 for 4-byte, 16 for 2-byte, 32 for 1-byte dtypes.
    return {4: 8, 2: 16, 1: 32}.get(jnp.dtype(dtype).itemsize, 8)


def _dice_kernel(x_ref, t_ref, o_ref):
    i = pl.program_id(0)  # single "arbitrary" reduction axis

    @pl.when(i == 0)
    def _():
        o_ref[...] = jnp.zeros_like(o_ref)

    x = x_ref[...].astype(jnp.float32)
    t = t_ref[...].astype(jnp.float32)

    # sigmoid via tanh: the transcendental lands on the EUP slot, no VALU
    # divide chain and no select path.  Exact (matches XLA's logistic).
    s = 0.5 * jnp.tanh(0.5 * x) + 0.5

    # Reduce only the leading slab axis -> pure full-width VALU adds into the
    # three dense (SUB, 128) accumulator slabs of the resident output block.
    o_ref[0] += jnp.sum(s * t, axis=0)   # intersection partials
    o_ref[1] += jnp.sum(s, axis=0)       # sum(sigmoid(x)) partials
    o_ref[2] += jnp.sum(t, axis=0)       # sum(targets) partials


def dice_loss(inputs, targets, smooth=1.0):
    """Pallas implementation of DiceLoss.forward(inputs, targets, smooth)."""
    x = inputs.reshape(-1)
    t = targets.reshape(-1)
    if x.dtype == jnp.bool_:
        x = x.astype(jnp.float32)
    if t.dtype == jnp.bool_:
        t = t.astype(jnp.float32)
    n = x.shape[0]

    sub = max(_sublanes_for(x.dtype), _sublanes_for(t.dtype))
    granule = sub * _LANES                     # one (SUB, 128) slab
    num_slabs = n // granule

    inter = jnp.float32(0.0)
    s_sum = jnp.float32(0.0)
    t_sum = jnp.float32(0.0)
    n_kernel = 0

    if num_slabs > 0:
        itemsize = max(jnp.dtype(x.dtype).itemsize, jnp.dtype(t.dtype).itemsize)
        cap_slabs = max(1, _TARGET_BUF_BYTES // (granule * itemsize))
        steps = -(-num_slabs // cap_slabs)       # cdiv
        tile_slabs = num_slabs // steps          # <= cap_slabs, divides evenly
        g_main = tile_slabs * steps              # slabs the kernel covers
        n_kernel = g_main * granule

        # Free reshape when n_kernel == n (the common, aligned case) — no pad,
        # no copy.  Otherwise the prefix slice is the only extra traffic and
        # the small remainder goes through the jnp tail path below.
        xm = (x if n_kernel == n else x[:n_kernel]).reshape(g_main, sub, _LANES)
        tm = (t if n_kernel == n else t[:n_kernel]).reshape(g_main, sub, _LANES)

        in_spec = pl.BlockSpec((tile_slabs, sub, _LANES), lambda i: (i, 0, 0))
        out_spec = pl.BlockSpec((3, sub, _LANES), lambda i: (0, 0, 0))

        cost = pl.CostEstimate(
            flops=8 * n_kernel,
            transcendentals=n_kernel,
            bytes_accessed=n_kernel * (jnp.dtype(x.dtype).itemsize
                                       + jnp.dtype(t.dtype).itemsize)
                           + 3 * sub * _LANES * 4,
        )

        partials = pl.pallas_call(
            _dice_kernel,
            out_shape=jax.ShapeDtypeStruct((3, sub, _LANES), jnp.float32),
            grid_spec=pltpu.PrefetchScalarGridSpec(
                num_scalar_prefetch=0,
                grid=(steps,),
                in_specs=[in_spec, in_spec],
                out_specs=out_spec,
            ),
            compiler_params=pltpu.CompilerParams(
                dimension_semantics=("arbitrary",),
                vmem_limit_bytes=_VMEM_LIMIT_BYTES),
            cost_estimate=cost,
        )(xm, tm)

        # One cross-lane / cross-sublane reduce, in the wrapper (tiny).
        inter = jnp.sum(partials[0])
        s_sum = jnp.sum(partials[1])
        t_sum = jnp.sum(partials[2])

    if n_kernel < n:
        # Sub-slab / sub-step tail (always smaller than one grid step's worth
        # of slabs plus one slab): plain jnp, no full-array padding copy.
        xt = x[n_kernel:].astype(jnp.float32)
        tt = t[n_kernel:].astype(jnp.float32)
        st = jax.nn.sigmoid(xt)
        inter = inter + jnp.sum(st * tt)
        s_sum = s_sum + jnp.sum(st)
        t_sum = t_sum + jnp.sum(tt)

    smooth = jnp.float32(smooth)
    dice = (2.0 * inter + smooth) / (s_sum + t_sum + smooth)
    return 1.0 - dice


def _dice_loss_ref(inputs, targets, smooth=1.0):
    s = jax.nn.sigmoid(inputs.reshape(-1).astype(jnp.float32))
    t = targets.reshape(-1).astype(jnp.float32)
    inter = jnp.sum(s * t)
    dice = (2.0 * inter + smooth) / (jnp.sum(s) + jnp.sum(t) + smooth)
    return 1.0 - dice


if __name__ == "__main__":
    key = jax.random.PRNGKey(0)
    k1, k2, k3, k4 = jax.random.split(key, 4)
    loss_fn = jax.jit(dice_loss)

    # Aligned case: NCHW (2, 4, 16, 16) -> n = 2048 = 2 slabs, pure kernel path.
    inputs = jax.random.normal(k1, (2, 4, 16, 16), dtype=jnp.float32)
    targets = (jax.random.uniform(k2, (2, 4, 16, 16)) > 0.5).astype(jnp.float32)
    loss = jax.block_until_ready(loss_fn(inputs, targets))
    ref = jax.block_until_ready(_dice_loss_ref(inputs, targets))
    assert jnp.allclose(loss, ref, rtol=1e-5, atol=1e-5), (loss, ref)

    # Unaligned case: n = 3*5*9*13 = 1755 -> kernel covers the first slab,
    # the <1-slab tail is folded in by the wrapper (no full-array pad/copy).
    inputs2 = jax.random.normal(k3, (3, 5, 9, 13), dtype=jnp.float32)
    targets2 = (jax.random.uniform(k4, (3, 5, 9, 13)) > 0.5).astype(jnp.float32)
    loss2 = jax.block_until_ready(loss_fn(inputs2, targets2))
    ref2 = jax.block_until_ready(_dice_loss_ref(inputs2, targets2))
    assert jnp.allclose(loss2, ref2, rtol=1e-5, atol=1e-5), (loss2, ref2)

    print("KERNEL_OK")
</pallas_src>

<mosaic_0001>
module attributes {stable_mosaic.version = 11 : i64} {
  func.func @_dice_kernel(%arg0: i32, %arg1: memref<2x8x128xf32, #tpu.memory_space<vmem>>, %arg2: memref<2x8x128xf32, #tpu.memory_space<vmem>>, %arg3: memref<3x8x128xf32, #tpu.memory_space<vmem>>) attributes {dimension_semantics = [#tpu.dimension_semantics<arbitrary>], iteration_bounds = array<i64: 1>, scalar_prefetch = 0 : i64, scratch_operands = 0 : i64, tpu.core_type = #tpu.core_type<tc>, window_params = [{transform_indices = @transform_0, window_bounds = array<i64: 2, 8, 128>}, {transform_indices = @transform_1, window_bounds = array<i64: 2, 8, 128>}, {pipeline_mode = #tpu.pipeline_mode<synchronous>, transform_indices = @transform_2, window_bounds = array<i64: 3, 8, 128>}]} {
    %c0_i32 = arith.constant 0 : i32
    %0 = arith.cmpi eq, %arg0, %c0_i32 : i32
    %1 = arith.extui %0 : i1 to i32
    %c0_i32_0 = arith.constant 0 : i32
    %2 = arith.cmpi ne, %1, %c0_i32_0 : i32
    scf.if %2 {
      %cst_27 = arith.constant 0.000000e+00 : f32
      %34 = vector.broadcast %cst_27 : f32 to vector<3x8x128xf32>
      %c0_28 = arith.constant 0 : index
      %c0_29 = arith.constant 0 : index
      %c0_30 = arith.constant 0 : index
      %35 = vector.load %arg3[%c0_28, %c0_29, %c0_30] : memref<3x8x128xf32, #tpu.memory_space<vmem>>, vector<3x8x128xf32>
      tpu.vector_store %arg3[%c0_28, %c0_29, %c0_30], %34 {strides = array<i32>} : memref<3x8x128xf32, #tpu.memory_space<vmem>>, vector<3x8x128xf32>,
    } else {
    }
    %c0 = arith.constant 0 : index
    %c0_1 = arith.constant 0 : index
    %c0_2 = arith.constant 0 : index
    %3 = vector.load %arg1[%c0, %c0_1, %c0_2] : memref<2x8x128xf32, #tpu.memory_space<vmem>>, vector<2x8x128xf32>
    %c0_3 = arith.constant 0 : index
    %c0_4 = arith.constant 0 : index
    %c0_5 = arith.constant 0 : index
    %4 = vector.load %arg2[%c0_3, %c0_4, %c0_5] : memref<2x8x128xf32, #tpu.memory_space<vmem>>, vector<2x8x128xf32>
    %cst = arith.constant 5.000000e-01 : f32
    %5 = vector.broadcast %cst : f32 to vector<2x8x128xf32>
    %6 = arith.mulf %5, %3 : vector<2x8x128xf32>
    %7 = math.tanh %6 : vector<2x8x128xf32>
    %cst_6 = arith.constant 5.000000e-01 : f32
    %8 = vector.broadcast %cst_6 : f32 to vector<2x8x128xf32>
    %9 = arith.mulf %8, %7 : vector<2x8x128xf32>
    %cst_7 = arith.constant 5.000000e-01 : f32
    %10 = vector.broadcast %cst_7 : f32 to vector<2x8x128xf32>
    %11 = arith.addf %9, %10 : vector<2x8x128xf32>
    %c0_8 = arith.constant 0 : index
    %c0_9 = arith.constant 0 : index
    %c0_10 = arith.constant 0 : index
    %12 = vector.load %arg3[%c0_8, %c0_9, %c0_10] : memref<3x8x128xf32, #tpu.memory_space<vmem>>, vector<1x8x128xf32>
    %13 = vector.shape_cast %12 : vector<1x8x128xf32> to vector<8x128xf32>
    %14 = arith.mulf %11, %4 : vector<2x8x128xf32>
    %cst_11 = arith.constant dense<0.000000e+00> : vector<8x128xf32>
    %15 = vector.multi_reduction <add>, %14, %cst_11 [0] : vector<2x8x128xf32> to vector<8x128xf32>
    %16 = arith.addf %13, %15 : vector<8x128xf32>
    %c0_12 = arith.constant 0 : index
    %c0_13 = arith.constant 0 : index
    %c0_14 = arith.constant 0 : index
    %17 = vector.load %arg3[%c0_12, %c0_13, %c0_14] : memref<3x8x128xf32, #tpu.memory_space<vmem>>, vector<1x8x128xf32>
    %18 = vector.shape_cast %17 : vector<1x8x128xf32> to vector<8x128xf32>
    %19 = vector.shape_cast %16 : vector<8x128xf32> to vector<1x8x128xf32>
    tpu.vector_store %arg3[%c0_12, %c0_13, %c0_14], %19 {strides = array<i32>} : memref<3x8x128xf32, #tpu.memory_space<vmem>>, vector<1x8x128xf32>,
    %c1 = arith.constant 1 : index
    %c0_15 = arith.constant 0 : index
    %c0_16 = arith.constant 0 : index
    %20 = vector.load %arg3[%c1, %c0_15, %c0_16] : memref<3x8x128xf32, #tpu.memory_space<vmem>>, vector<1x8x128xf32>
    %21 = vector.shape_cast %20 : vector<1x8x128xf32> to vector<8x128xf32>
    %cst_17 = arith.constant dense<0.000000e+00> : vector<8x128xf32>
    %22 = vector.multi_reduction <add>, %11, %cst_17 [0] : vector<2x8x128xf32> to vector<8x128xf32>
    %23 = arith.addf %21, %22 : vector<8x128xf32>
    %c1_18 = arith.constant 1 : index
    %c0_19 = arith.constant 0 : index
    %c0_20 = arith.constant 0 : index
    %24 = vector.load %arg3[%c1_18, %c0_19, %c0_20] : memref<3x8x128xf32, #tpu.memory_space<vmem>>, vector<1x8x128xf32>
    %25 = vector.shape_cast %24 : vector<1x8x128xf32> to vector<8x128xf32>
    %26 = vector.shape_cast %23 : vector<8x128xf32> to vector<1x8x128xf32>
    tpu.vector_store %arg3[%c1_18, %c0_19, %c0_20], %26 {strides = array<i32>} : memref<3x8x128xf32, #tpu.memory_space<vmem>>, vector<1x8x128xf32>,
    %c2 = arith.constant 2 : index
    %c0_21 = arith.constant 0 : index
    %c0_22 = arith.constant 0 : index
    %27 = vector.load %arg3[%c2, %c0_21, %c0_22] : memref<3x8x128xf32, #tpu.memory_space<vmem>>, vector<1x8x128xf32>
    %28 = vector.shape_cast %27 : vector<1x8x128xf32> to vector<8x128xf32>
    %cst_23 = arith.constant dense<0.000000e+00> : vector<8x128xf32>
    %29 = vector.multi_reduction <add>, %4, %cst_23 [0] : vector<2x8x128xf32> to vector<8x128xf32>
    %30 = arith.addf %28, %29 : vector<8x128xf32>
    %c2_24 = arith.constant 2 : index
    %c0_25 = arith.constant 0 : index
    %c0_26 = arith.constant 0 : index
    %31 = vector.load %arg3[%c2_24, %c0_25, %c0_26] : memref<3x8x128xf32, #tpu.memory_space<vmem>>, vector<1x8x128xf32>
    %32 = vector.shape_cast %31 : vector<1x8x128xf32> to vector<8x128xf32>
    %33 = vector.shape_cast %30 : vector<8x128xf32> to vector<1x8x128xf32>
    tpu.vector_store %arg3[%c2_24, %c0_25, %c0_26], %33 {strides = array<i32>} : memref<3x8x128xf32, #tpu.memory_space<vmem>>, vector<1x8x128xf32>,
    return
  }
  func.func @transform_0(%arg0: i32) -> (i32, i32, i32) {
    %c0_i32 = arith.constant 0 : i32
    %c0_i32_0 = arith.constant 0 : i32
    %c0_i32_1 = arith.constant 0 : i32
    return %arg0, %c0_i32, %c0_i32_0 : i32, i32, i32
  }
  func.func @transform_1(%arg0: i32) -> (i32, i32, i32) {
    %c0_i32 = arith.constant 0 : i32
    %c0_i32_0 = arith.constant 0 : i32
    %c0_i32_1 = arith.constant 0 : i32
    return %arg0, %c0_i32, %c0_i32_0 : i32, i32, i32
  }
  func.func @transform_2(%arg0: i32) -> (i32, i32, i32) {
    %c0_i32 = arith.constant 0 : i32
    %c0_i32_0 = arith.constant 0 : i32
    %c0_i32_1 = arith.constant 0 : i32
    %c0_i32_2 = arith.constant 0 : i32
    return %c0_i32, %c0_i32_0, %c0_i32_1 : i32, i32, i32
  }
}

</mosaic_0001>

<llo_original>
// kernel: dice_loss.1
$region0: #{dice_loss.1}
  #allocation0 [shape = 'u32[]', space=smem, size = 0x4, offset = 0x4, fixed_abs, tag = 'smem constant byte address 0x4 - core index']
  #allocation1 [shape = 'u32[144,128]{1,0:T(1,128)}', space=vmem, size = 0x12000, scoped, tag = 'internal scratch']
  %s0 = inlined_call_operand.vmem [shape: f32[2,8,128], index: 0, kind: input, shape index: {}]
  %s1 = inlined_call_operand.vmem [shape: f32[2,8,128], index: 1, kind: input, shape index: {}]
  %s2 = inlined_call_operand.vmem [shape: f32[3,8,128], index: 2, kind: output, shape index: {}]
  %s3 = sld [smem:[#allocation0]]
  $region22: #{dice_loss.1} parent=0
    _
  %s5 = ssub.s32 1, %s3
  %s6 = scalar_select 0, %s5, %s3
  // Predicated region
  $region2: #{dice_loss.1} parent=0 // pred_check
    _
  $region3: #{dice_loss.1} parent=0 // pred_check_branch
    %8 = sbr.rel (0) target = $region5
  $region4: #{dice_loss.1} parent=0 // pred_region
    _
  $region5: #{dice_loss.1} parent=0 // pred_fallthru
    _
  // Predicated region
  $region6: #{dice_loss.1} parent=0 // pred_check
    _
  $region7: #{dice_loss.1} parent=0 // pred_check_branch
    %10 = sbr.rel (0) target = $region9
  $region8: #{dice_loss.1} parent=0 // pred_region
    _
  $region9: #{dice_loss.1} parent=0 // pred_fallthru
    _
  %p11 = scmp.eq.s32.totalorder 0, 0
  // Predicated region
  $region10: #{dice_loss.1} parent=0 // pred_check
    %p12 = pneg %p11
  $region11: #{dice_loss.1} parent=0 // pred_check_branch
    %14 = sbr.rel (%p12) target = $region13
  $region12: #{dice_loss.1} parent=0 // pred_region
    %15 = vst [vmem:[%s2] sm:$0xff] 0.0
    %16 = vst [vmem:[%s2 + $0x8] sm:$0xff] 0.0
    %17 = vst [vmem:[%s2 + $0x10] sm:$0xff] 0.0
  $region13: #{dice_loss.1} parent=0 // pred_fallthru
    _
  %v18 = vld [vmem:[%s0] sm:$0xff]
  %v19 = vld [vmem:[%s0 + $0x8] sm:$0xff]
  %v20 = vld [vmem:[%s1] sm:$0xff]
  %v21 = vld [vmem:[%s1 + $0x8] sm:$0xff]
  %v22 = vmul.f32 %v18, 0.5
  %v23 = vmul.f32 %v19, 0.5
  %v24 = vtanh.pop %v22
  %v25 = vtanh.pop %v23
  %v26 = vmul.f32 %v24, 0.5
  %v27 = vmul.f32 %v25, 0.5
  %v28 = vadd.f32 %v26, 0.5
  %v29 = vadd.f32 %v27, 0.5
  %v30 = vld [vmem:[%s2] sm:$0xff]
  %v31 = vmul.f32 %v28, %v20
  %v32 = vmul.f32 %v29, %v21
  %v33 = vadd.f32 %v31, %v32
  %v34 = vadd.f32 %v30, %v33
  %35 = vst [vmem:[%s2] sm:$0xff] %v34
  %s36 = scalar_lea.vmem %s2, 8
  %v37 = vld [vmem:[%s36] sm:$0xff]
  %v38 = vadd.f32 %v28, %v29
  %v39 = vadd.f32 %v37, %v38
  %40 = vst [vmem:[%s36] sm:$0xff] %v39
  %s41 = scalar_lea.vmem %s2, 16
  %v42 = vld [vmem:[%s41] sm:$0xff]
  %v43 = vadd.f32 %v20, %v21
  %v44 = vadd.f32 %v42, %v43
  %45 = vst [vmem:[%s41] sm:$0xff] %v44
  // Predicated region
  $region14: #{dice_loss.1} parent=0 // pred_check
    _
  $region15: #{dice_loss.1} parent=0 // pred_check_branch
    %47 = sbr.rel (0) target = $region17
  $region16: #{dice_loss.1} parent=0 // pred_region
    _
  $region17: #{dice_loss.1} parent=0 // pred_fallthru
    _
  // Predicated region
  $region18: #{dice_loss.1} parent=0 // pred_check
    _
  $region19: #{dice_loss.1} parent=0 // pred_check_branch
    %49 = sbr.rel (0) target = $region21
  $region20: #{dice_loss.1} parent=0 // pred_region
    _
  $region21: #{dice_loss.1} parent=0 // pred_fallthru
    _

</llo_original>
